<compile_context>
chip_gen: v6e
topology: v6e:2x2x1
jax: 0.10.0
libtpu: 0.0.40
codegen_flags: <defaults>
</compile_context>

<pallas_src>
import functools
import math

import jax
import jax.numpy as jnp
from jax.experimental import pallas as pl
from jax.experimental.pallas import tpu as pltpu

_MIB = 1024 * 1024


def _cdiv(a, b):
    return -(-a // b)


def _round_up(x, mult):
    return _cdiv(x, mult) * mult


def _sublane(dtype):
    # Minimum second-minor tile: 8 (4-byte), 16 (2-byte), 32 (1-byte) dtypes.
    return max(8, 32 // jnp.dtype(dtype).itemsize)


@functools.lru_cache(maxsize=1)
def _vmem_capacity_bytes():
    try:
        return int(pltpu.get_tpu_info().vmem_capacity_bytes)
    except Exception:
        return 64 * _MIB  # conservative (v7x-sized) fallback


def _spec(block_shape, index_map, *, buffers=None):
    """BlockSpec; optionally request an explicit buffer count (graceful fallback)."""
    if buffers is not None:
        try:
            return pl.BlockSpec(block_shape, index_map,
                                pipeline_mode=pl.Buffered(buffers))
        except (TypeError, AttributeError):
            pass
    return pl.BlockSpec(block_shape, index_map)


def _lin_tanh_kernel(x_ref, wt_ref, b_ref, o_ref):
    # x_ref  : (TM, Dp)            VMEM
    # wt_ref : (Dp, Dp) | (Dp, TN) VMEM  -- weight already in (in, out) layout
    # b_ref  : (1, Dp)  | (1, TN)  VMEM
    # o_ref  : (TM, Dp) | (TM, TN) VMEM
    y = jnp.dot(x_ref[...], wt_ref[...], preferred_element_type=jnp.float32)
    y = y + b_ref[...].astype(jnp.float32)
    o_ref[...] = jnp.tanh(y).astype(o_ref.dtype)


@jax.jit
def _lin_tanh_xla(x, weight, bias):
    # Tiny-shape fast path: fused XLA beats the pallas launch overhead.
    return jnp.tanh(jnp.einsum("...i,oi->...o", x, weight) + bias).astype(x.dtype)


@functools.partial(jax.jit, static_argnames=("tm", "tn", "stream_n", "vmem_limit"))
def _lin_tanh_pallas(x, weight, bias, *, tm, tn, stream_n, vmem_limit):
    d_model = x.shape[-1]
    lead = x.shape[:-1]
    m = math.prod(lead)
    dp = _round_up(d_model, 128)
    pad_d = dp - d_model

    x2d = x.reshape(m, d_model)
    if pad_d:
        # Exact: zero-padding the contraction dim adds zero to every dot product.
        x2d = jnp.pad(x2d, ((0, 0), (0, pad_d)))
        weight = jnp.pad(weight, ((0, pad_d), (0, pad_d)))
        bias = jnp.pad(bias, (0, pad_d))
    # One-time transpose to (in, out) layout: the kernel contracts x(dim 1)
    # with W^T(dim 0) -> plain MXU matmul, no per-tile XLU transpose.
    wt = weight.T
    b2d = bias.reshape(1, dp)

    itemsize = jnp.dtype(x.dtype).itemsize
    w_itemsize = jnp.dtype(wt.dtype).itemsize
    cost = pl.CostEstimate(
        flops=2 * m * dp * dp,
        transcendentals=m * dp,
        bytes_accessed=int(itemsize * 2 * m * dp + w_itemsize * (dp * dp + dp)),
    )

    if not stream_n:
        # Resident-weight path: W^T and b live in VMEM (single-buffered),
        # x / out tiles stream over M with the BlockSpec double-buffer pipeline.
        grid = (_cdiv(m, tm),)
        in_specs = [
            _spec((tm, dp), lambda i: (i, 0)),             # x  : tiled over M
            _spec((dp, dp), lambda i: (0, 0), buffers=1),  # W^T: VMEM-resident
            _spec((1, dp), lambda i: (0, 0), buffers=1),   # b  : VMEM-resident
        ]
        out_specs = pl.BlockSpec((tm, dp), lambda i: (i, 0))
        dim_sem = ("parallel",)
    else:
        # Streaming-weight path (large d_model): tile the output-feature axis.
        # x block index is constant across the inner N axis -> fetched once per
        # M tile; W^T / bias / output blocks stream.
        grid = (_cdiv(m, tm), dp // tn)
        in_specs = [
            _spec((tm, dp), lambda i, j: (i, 0)),          # x  : per-M tile
            _spec((dp, tn), lambda i, j: (0, j)),          # W^T: streamed over N
            _spec((1, tn), lambda i, j: (0, j)),           # b  : streamed over N
        ]
        out_specs = pl.BlockSpec((tm, tn), lambda i, j: (i, j))
        dim_sem = ("parallel", "parallel")

    out2d = pl.pallas_call(
        _lin_tanh_kernel,
        out_shape=jax.ShapeDtypeStruct((m, dp), x.dtype),
        grid_spec=pltpu.PrefetchScalarGridSpec(
            num_scalar_prefetch=0,
            grid=grid,
            in_specs=in_specs,
            out_specs=out_specs,
        ),
        compiler_params=pltpu.CompilerParams(
            dimension_semantics=dim_sem,
            vmem_limit_bytes=vmem_limit,
        ),
        cost_estimate=cost,
    )(x2d, wt, b2d)

    if pad_d:
        out2d = out2d[:, :d_model]
    return out2d.reshape(*lead, d_model)


def lin_tanh(x, weight, bias, *, tm=None, force_pallas=False, _force_stream=False):
    """tanh(x @ weight.T + bias)  ==  nn.Tanh()(nn.Linear(d_model, d_model)(x)).

    x      : (..., d_model)
    weight : (d_model, d_model)   torch nn.Linear layout (out_features, in_features)
    bias   : (d_model,)
    """
    d_model = x.shape[-1]
    lead = x.shape[:-1]
    m = math.prod(lead)

    if not force_pallas and m * d_model <= 64 * 1024:
        return _lin_tanh_xla(x, weight, bias)

    sub = _sublane(x.dtype)
    dp = _round_up(d_model, 128)
    itemsize = jnp.dtype(x.dtype).itemsize
    w_itemsize = jnp.dtype(weight.dtype).itemsize

    # Generation-aware budgets (VMEM capacity distinguishes v7x from v5e/v6e).
    vmem_cap = _vmem_capacity_bytes()
    if vmem_cap <= 64 * _MIB:       # v7x-class: 64 MiB VMEM per TC, 2 TensorCores
        limit_cap = 56 * _MIB
        tm_default = 512
    else:                           # v5e / v6e: 128 MiB VMEM, 1 TensorCore
        limit_cap = 100 * _MIB
        tm_default = 1024

    tm_req = tm if tm is not None else tm_default

    # Pick TM: at least 2 M tiles whenever possible (keeps both v7x TCs busy),
    # rounded to the dtype-dependent sublane tile.
    if m >= 2 * sub:
        tm_eff = min(tm_req, _round_up(_cdiv(m, 2), sub))
    else:
        tm_eff = min(tm_req, _round_up(m, sub))
    tm_eff = max(sub, _round_up(tm_eff, sub))

    def resident_need(tm_):
        return (2 * 2 * tm_ * dp * itemsize     # x + out tiles, double-buffered
                + dp * dp * w_itemsize          # W^T, resident, single-buffered
                + 2 * dp * w_itemsize)          # bias

    # Shrink TM until the resident-weight footprint fits the budget.
    while tm_eff > sub and resident_need(tm_eff) > limit_cap:
        tm_eff = max(sub, _round_up(tm_eff // 2, sub))

    stream_n = _force_stream or resident_need(tm_eff) > limit_cap
    tn = 0
    if stream_n:
        # W^T does not fit resident: stream it over the output-feature axis.
        tn = 512 if dp % 512 == 0 else (256 if dp % 256 == 0 else 128)

        def stream_need(tm_, tn_):
            return (2 * tm_ * dp * itemsize       # x tiles (double-buffered)
                    + 2 * tm_ * tn_ * itemsize    # out tiles
                    + 2 * dp * tn_ * w_itemsize   # W^T tiles
                    + 2 * tn_ * w_itemsize)       # bias tiles

        while tm_eff > sub and stream_need(tm_eff, tn) > limit_cap:
            tm_eff = max(sub, _round_up(tm_eff // 2, sub))
        while tn > 128 and stream_need(tm_eff, tn) > limit_cap:
            tn //= 2
        vmem_need = stream_need(tm_eff, tn)
    else:
        vmem_need = resident_need(tm_eff)

    vmem_limit = int(min(max(vmem_need * 5 // 4 + _MIB, 16 * _MIB), limit_cap))

    return _lin_tanh_pallas(x, weight, bias, tm=tm_eff, tn=tn,
                            stream_n=stream_n, vmem_limit=vmem_limit)


if __name__ == "__main__":
    # Small shapes consistent with the module: (batch, seq, d_model).
    batch, seq, d_model = 2, 8, 32

    key = jax.random.PRNGKey(0)
    kx, kw, kb = jax.random.split(key, 3)

    x = jax.random.normal(kx, (batch, seq, d_model), dtype=jnp.float32)

    # torch.nn.Linear-style uniform init bound.
    bound = 1.0 / math.sqrt(d_model)
    weight = jax.random.uniform(
        kw, (d_model, d_model), minval=-bound, maxval=bound, dtype=jnp.float32)
    bias = jax.random.uniform(
        kb, (d_model,), minval=-bound, maxval=bound, dtype=jnp.float32)

    ref = jnp.tanh(x @ weight.T + bias)

    # 1) Pallas resident-weight path at the demo size (padded lanes, 2 M tiles).
    out = jax.block_until_ready(lin_tanh(x, weight, bias, force_pallas=True))
    assert out.shape == (batch, seq, d_model)
    assert jnp.allclose(out, ref, atol=1e-3, rtol=1e-3)

    # 2) Multi-M-tile path with a partial (masked) last block and padded d_model.
    b2, s2, d2 = 4, 300, 96
    x2 = jax.random.normal(kx, (b2, s2, d2), dtype=jnp.float32)
    w2 = jax.random.uniform(kw, (d2, d2), minval=-0.1, maxval=0.1, dtype=jnp.float32)
    bb2 = jax.random.uniform(kb, (d2,), minval=-0.1, maxval=0.1, dtype=jnp.float32)
    out2 = jax.block_until_ready(lin_tanh(x2, w2, bb2, tm=256, force_pallas=True))
    ref2 = jnp.tanh(x2 @ w2.T + bb2)
    assert out2.shape == (b2, s2, d2)
    assert jnp.allclose(out2, ref2, atol=1e-3, rtol=1e-3)

    # 3) Streaming-weight (N-tiled) path, exercised at a small size.
    b3, s3, d3 = 2, 96, 384
    x3 = jax.random.normal(kx, (b3, s3, d3), dtype=jnp.float32)
    w3 = jax.random.uniform(kw, (d3, d3), minval=-0.05, maxval=0.05, dtype=jnp.float32)
    bb3 = jax.random.uniform(kb, (d3,), minval=-0.05, maxval=0.05, dtype=jnp.float32)
    out3 = jax.block_until_ready(
        lin_tanh(x3, w3, bb3, force_pallas=True, _force_stream=True))
    ref3 = jnp.tanh(x3 @ w3.T + bb3)
    assert out3.shape == (b3, s3, d3)
    assert jnp.allclose(out3, ref3, atol=1e-3, rtol=1e-3)

    # 4) Tiny-shape XLA fast path still matches.
    out4 = jax.block_until_ready(lin_tanh(x, weight, bias))
    assert jnp.allclose(out4, ref, atol=1e-3, rtol=1e-3)

    print("KERNEL_OK")
</pallas_src>

<mosaic_0001>
module attributes {stable_mosaic.version = 11 : i64} {
  func.func @_lin_tanh_kernel(%arg0: i32, %arg1: memref<8x128xf32, #tpu.memory_space<vmem>>, %arg2: memref<128x128xf32, #tpu.memory_space<vmem>>, %arg3: memref<1x128xf32, #tpu.memory_space<vmem>>, %arg4: memref<8x128xf32, #tpu.memory_space<vmem>>) attributes {dimension_semantics = [#tpu.dimension_semantics<parallel>], iteration_bounds = array<i64: 2>, scalar_prefetch = 0 : i64, scratch_operands = 0 : i64, tpu.core_type = #tpu.core_type<tc>, window_params = [{transform_indices = @transform_0, window_bounds = array<i64: 8, 128>}, {pipeline_mode = #tpu.pipeline_mode<synchronous>, transform_indices = @transform_1, window_bounds = array<i64: 128, 128>}, {pipeline_mode = #tpu.pipeline_mode<synchronous>, transform_indices = @transform_2, window_bounds = array<i64: 1, 128>}, {transform_indices = @transform_3, window_bounds = array<i64: 8, 128>}]} {
    %c0 = arith.constant 0 : index
    %c0_0 = arith.constant 0 : index
    %0 = vector.load %arg1[%c0, %c0_0] : memref<8x128xf32, #tpu.memory_space<vmem>>, vector<8x128xf32>
    %c0_1 = arith.constant 0 : index
    %c0_2 = arith.constant 0 : index
    %1 = vector.load %arg2[%c0_1, %c0_2] : memref<128x128xf32, #tpu.memory_space<vmem>>, vector<128x128xf32>
    %cst = arith.constant dense<0.000000e+00> : vector<8x128xf32>
    %2 = tpu.matmul %0, %1, %cst {dimension_numbers = #tpu.dot_dimension_numbers<[1], [0], [0], [1], [0, 0, 1, 1], [], []>} : vector<8x128xf32>, vector<128x128xf32>, vector<8x128xf32> -> vector<8x128xf32>
    %c0_3 = arith.constant 0 : index
    %c0_4 = arith.constant 0 : index
    %3 = vector.load %arg3[%c0_3, %c0_4] : memref<1x128xf32, #tpu.memory_space<vmem>>, vector<1x128xf32>
    %4 = vector.broadcast %3 : vector<1x128xf32> to vector<8x128xf32>
    %5 = arith.addf %2, %4 : vector<8x128xf32>
    %6 = math.tanh %5 : vector<8x128xf32>
    %c0_5 = arith.constant 0 : index
    %c0_6 = arith.constant 0 : index
    %7 = vector.load %arg4[%c0_5, %c0_6] : memref<8x128xf32, #tpu.memory_space<vmem>>, vector<8x128xf32>
    tpu.vector_store %arg4[%c0_5, %c0_6], %6 {strides = array<i32>} : memref<8x128xf32, #tpu.memory_space<vmem>>, vector<8x128xf32>,
    return
  }
  func.func @transform_0(%arg0: i32) -> (i32, i32) {
    %c0_i32 = arith.constant 0 : i32
    %c0_i32_0 = arith.constant 0 : i32
    return %arg0, %c0_i32 : i32, i32
  }
  func.func @transform_1(%arg0: i32) -> (i32, i32) {
    %c0_i32 = arith.constant 0 : i32
    %c0_i32_0 = arith.constant 0 : i32
    %c0_i32_1 = arith.constant 0 : i32
    return %c0_i32, %c0_i32_0 : i32, i32
  }
  func.func @transform_2(%arg0: i32) -> (i32, i32) {
    %c0_i32 = arith.constant 0 : i32
    %c0_i32_0 = arith.constant 0 : i32
    %c0_i32_1 = arith.constant 0 : i32
    return %c0_i32, %c0_i32_0 : i32, i32
  }
  func.func @transform_3(%arg0: i32) -> (i32, i32) {
    %c0_i32 = arith.constant 0 : i32
    %c0_i32_0 = arith.constant 0 : i32
    return %arg0, %c0_i32 : i32, i32
  }
}

</mosaic_0001>

<llo_original>
// kernel: _lin_tanh_pallas.1
$region0: #{_lin_tanh_pallas.1}
  #allocation0 [shape = 'u32[]', space=smem, size = 0x4, offset = 0x4, fixed_abs, tag = 'smem constant byte address 0x4 - core index']
  #allocation1 [shape = 'u32[144,128]{1,0:T(1,128)}', space=vmem, size = 0x12000, scoped, tag = 'internal scratch']
  %s0 = inlined_call_operand.vmem [shape: f32[16,128], index: 0, kind: input, shape index: {}]
  %s1 = inlined_call_operand.vmem [shape: f32[128,128], index: 1, kind: input, shape index: {}]
  %s2 = inlined_call_operand.vmem [shape: f32[1,128], index: 2, kind: input, shape index: {}]
  %s3 = inlined_call_operand.vmem [shape: f32[16,128], index: 3, kind: output, shape index: {}]
  %s4 = sld [smem:[#allocation0]]
  $region45: #{_lin_tanh_pallas.1} parent=0
    _
  %s6 = ssub.s32 1, %s4
  %s7 = scalar_select 0, %s6, %s4
  loop: start=0, step=1, limit=4
  $region2: #{_lin_tanh_pallas.1} parent=0 // loop_pre_header
    _
  $region3: #{_lin_tanh_pallas.1} parent=0 // loop_header
    %s9 = sphi 0, %s13
    %p10 = scmp.ge.s32.totalorder %s9, 4
    %s19 = sphi 0, %s21
    %s22 = sphi 0, %s19
    %s23 = sphi 0, %s22
    %s39 = sphi 0, %s23
    %s43 = sphi 0, %s43
    %s45 = sphi 0, %s43
    %s46 = sphi 0, %s45
    %s60 = sphi 0, %s46
    %s64 = sphi 0, %s64
    %s66 = sphi 0, %s64
    %s67 = sphi 0, %s66
    %s81 = sphi 0, %s67
    %s87 = sphi 0, %s89
    %s90 = sphi 0, %s87
    %s91 = sphi 0, %s90
    %s107 = sphi 0, %s91
  $region4: #{_lin_tanh_pallas.1} parent=0 // loop_header_branch
    %12 = sbr.rel (%p10) target = $region8
  $region5: #{_lin_tanh_pallas.1} parent=0 // loop_body
    %s14 = ssub.s32 %s9, 1
    %s15 = ssub.s32 %s9, 2
    %s16 = sadd.s32 %s9, 1
    %s17 = ssub.s32 %s9, %s16
    %p18 = scmp.eq.s32.totalorder %s17, 0
    %s20 = sadd.s32 %s19, 1
    %s21 = scalar_select %p18, %s19, %s20
    %p24 = pneg %p18
    %p25 = scmp.eq.s32.totalorder %s9, 1
    %p26 = por %p24, %p25
    %p27 = scmp.ne.s32.totalorder %s19, %s22
    %p28 = scmp.eq.s32.totalorder %s9, 0
    %p29 = por %p27, %p28
    %p30 = scmp.ne.s32.totalorder %s19, %s22
    %p31 = scmp.eq.s32.totalorder %s14, 1
    %p32 = por %p30, %p31
    %p33 = scmp.ne.s32.totalorder %s22, %s23
    %p34 = scmp.eq.s32.totalorder %s14, 0
    %p35 = por %p33, %p34
    %p36 = scmp.ne.s32.totalorder %s22, %s23
    %p37 = scmp.eq.s32.totalorder %s15, 1
    %p38 = por %p36, %p37
    %p40 = scmp.ne.s32.totalorder %s23, %s39
    %p41 = scmp.eq.s32.totalorder %s15, 0
    %p42 = por %p40, %p41
    %s44 = sadd.s32 %s43, 1
    %p47 = scmp.eq.s32.totalorder %s9, 1
    %p48 = scmp.ne.s32.totalorder %s43, %s45
    %p49 = scmp.eq.s32.totalorder %s9, 0
    %p50 = por %p48, %p49
    %p51 = scmp.ne.s32.totalorder %s43, %s45
    %p52 = scmp.eq.s32.totalorder %s14, 1
    %p53 = por %p51, %p52
    %p54 = scmp.ne.s32.totalorder %s45, %s46
    %p55 = scmp.eq.s32.totalorder %s14, 0
    %p56 = por %p54, %p55
    %p57 = scmp.ne.s32.totalorder %s45, %s46
    %p58 = scmp.eq.s32.totalorder %s15, 1
    %p59 = por %p57, %p58
    %p61 = scmp.ne.s32.totalorder %s46, %s60
    %p62 = scmp.eq.s32.totalorder %s15, 0
    %p63 = por %p61, %p62
    %s65 = sadd.s32 %s64, 1
    %p68 = scmp.eq.s32.totalorder %s9, 1
    %p69 = scmp.ne.s32.totalorder %s64, %s66
    %p70 = scmp.eq.s32.totalorder %s9, 0
    %p71 = por %p69, %p70
    %p72 = scmp.ne.s32.totalorder %s64, %s66
    %p73 = scmp.eq.s32.totalorder %s14, 1
    %p74 = por %p72, %p73
    %p75 = scmp.ne.s32.totalorder %s66, %s67
    %p76 = scmp.eq.s32.totalorder %s14, 0
    %p77 = por %p75, %p76
    %p78 = scmp.ne.s32.totalorder %s66, %s67
    %p79 = scmp.eq.s32.totalorder %s15, 1
    %p80 = por %p78, %p79
    %p82 = scmp.ne.s32.totalorder %s67, %s81
    %p83 = scmp.eq.s32.totalorder %s15, 0
    %p84 = por %p82, %p83
    %s85 = ssub.s32 %s9, %s16
    %p86 = scmp.eq.s32.totalorder %s85, 0
    %s88 = sadd.s32 %s87, 1
    %s89 = scalar_select %p86, %s87, %s88
    %p92 = pneg %p86
    %p93 = scmp.eq.s32.totalorder %s9, 1
    %p94 = por %p92, %p93
    %p95 = scmp.ne.s32.totalorder %s87, %s90
    %p96 = scmp.eq.s32.totalorder %s9, 0
    %p97 = por %p95, %p96
    %p98 = scmp.ne.s32.totalorder %s87, %s90
    %p99 = scmp.eq.s32.totalorder %s14, 1
    %p100 = por %p98, %p99
    %p101 = scmp.ne.s32.totalorder %s90, %s91
    %p102 = scmp.eq.s32.totalorder %s14, 0
    %p103 = por %p101, %p102
    %p104 = scmp.ne.s32.totalorder %s90, %s91
    %p105 = scmp.eq.s32.totalorder %s15, 1
    %p106 = por %p104, %p105
    %p108 = scmp.ne.s32.totalorder %s91, %s107
    %p109 = scmp.eq.s32.totalorder %s15, 0
    %p110 = por %p108, %p109
    %p111 = scmp.le.s32.totalorder 1, %s9
    %p112 = scmp.lt.s32.totalorder %s9, 3
    %p113 = pnand %p111, %p112
    %p114 = pneg %p113
    // Predicated region
    $region9: #{_lin_tanh_pallas.1} parent=5 // pred_check
      _
    $region10: #{_lin_tanh_pallas.1} parent=5 // pred_check_branch
      %116 = sbr.rel (%p113) target = $region12
    $region11: #{_lin_tanh_pallas.1} parent=5 // pred_region
      %s117 = ssub.s32 %s9, 1
      // Predicated region
      $region13: #{_lin_tanh_pallas.1} parent=11 // pred_check
        %p118 = pneg %p56
      $region14: #{_lin_tanh_pallas.1} parent=11 // pred_check_branch
        %120 = sbr.rel (%p118) target = $region16
      $region15: #{_lin_tanh_pallas.1} parent=11 // pred_region
        _
      $region16: #{_lin_tanh_pallas.1} parent=11 // pred_fallthru
        _
      // Predicated region
      $region17: #{_lin_tanh_pallas.1} parent=11 // pred_check
        %p121 = pneg %p77
      $region18: #{_lin_tanh_pallas.1} parent=11 // pred_check_branch
        %123 = sbr.rel (%p121) target = $region20
      $region19: #{_lin_tanh_pallas.1} parent=11 // pred_region
        _
      $region20: #{_lin_tanh_pallas.1} parent=11 // pred_fallthru
        _
    $region12: #{_lin_tanh_pallas.1} parent=5 // pred_fallthru
      _
    %p124 = scmp.lt.s32.totalorder %s9, 2
    // Predicated region
    $region21: #{_lin_tanh_pallas.1} parent=5 // pred_check
      %p125 = pneg %p124
    $region22: #{_lin_tanh_pallas.1} parent=5 // pred_check_branch
      %127 = sbr.rel (%p125) target = $region24
    $region23: #{_lin_tanh_pallas.1} parent=5 // pred_region
      // Predicated region
      $region25: #{_lin_tanh_pallas.1} parent=23 // pred_check
        %p128 = pneg %p29
      $region26: #{_lin_tanh_pallas.1} parent=23 // pred_check_branch
        %130 = sbr.rel (%p128) target = $region28
      $region27: #{_lin_tanh_pallas.1} parent=23 // pred_region
        %p131 = scmp.lt.s32.totalorder %s9, 1
        %s132 = scalar_select %p131, %s9, 1
        %s133 = smul.addr %s132, 8
        %s134 = scalar_lea.vmem %s0, %s133
      $region28: #{_lin_tanh_pallas.1} parent=23 // pred_fallthru
        _
    $region24: #{_lin_tanh_pallas.1} parent=5 // pred_fallthru
      _
    %p135 = scmp.le.s32.totalorder 1, %s9
    %p136 = scmp.lt.s32.totalorder %s9, 3
    %p137 = pnand %p135, %p136
    %p138 = pneg %p137
    // Predicated region
    $region29: #{_lin_tanh_pallas.1} parent=5 // pred_check
      _
    $region30: #{_lin_tanh_pallas.1} parent=5 // pred_check_branch
      %140 = sbr.rel (%p137) target = $region32
    $region31: #{_lin_tanh_pallas.1} parent=5 // pred_region
      %s141 = ssub.s32 %s9, 1
      %p142 = scmp.lt.s32.totalorder %s14, 1
      %s143 = scalar_select %p142, %s14, 1
      %s144 = smul.addr %s143, 8
      %s145 = scalar_lea.vmem %s0, %s144
      %p146 = pneg %p35
      %p147 = pneg %p32
      %p148 = pneg %p56
      %p149 = pneg %p53
      %p150 = pneg %p77
      %p151 = pneg %p74
      %p152 = pneg %p103
      %p153 = pneg %p100
      %p154 = scmp.lt.s32.totalorder %s14, 1
      %s155 = scalar_select %p154, %s14, 1
      %s156 = smul.addr %s155, 8
      %s157 = scalar_lea.vmem %s3, %s156
      %p158 = scmp.lt.s32.totalorder %s14, 1
      %s159 = scalar_select %p158, %s14, 1
      %s160 = smul.addr %s159, 8
      %s161 = scalar_lea.vmem %s0, %s160
      %p162 = scmp.lt.s32.totalorder %s14, 1
      %s163 = scalar_select %p162, %s14, 1
      %s164 = smul.addr %s163, 8
      %s165 = scalar_lea.vmem %s3, %s164
      %v166 = vld [vmem:[%s161] sm:$0xff]
      %v167 = vld [vmem:[%s1] sm:$0xff]
      %v168 = vld [vmem:[%s1 + $0x8] sm:$0xff]
      %v169 = vld [vmem:[%s1 + $0x10] sm:$0xff]
      %v170 = vld [vmem:[%s1 + $0x18] sm:$0xff]
      %v171 = vld [vmem:[%s1 + $0x20] sm:$0xff]
      %v172 = vld [vmem:[%s1 + $0x28] sm:$0xff]
      %v173 = vld [vmem:[%s1 + $0x30] sm:$0xff]
      %v174 = vld [vmem:[%s1 + $0x38] sm:$0xff]
      %v175 = vld [vmem:[%s1 + $0x40] sm:$0xff]
      %v176 = vld [vmem:[%s1 + $0x48] sm:$0xff]
      %v177 = vld [vmem:[%s1 + $0x50] sm:$0xff]
      %v178 = vld [vmem:[%s1 + $0x58] sm:$0xff]
      %v179 = vld [vmem:[%s1 + $0x60] sm:$0xff]
      %v180 = vld [vmem:[%s1 + $0x68] sm:$0xff]
      %v181 = vld [vmem:[%s1 + $0x70] sm:$0xff]
      %v182 = vld [vmem:[%s1 + $0x78] sm:$0xff]
      %v183 = vld [vmem:[%s2] sm:$0x1]
      %v185 = vlaneseq
      %v186 = vshrl.u32 %v185, 7
      %v187 = vsub.s32 0, %v186
      %v188 = vrot.slane %v183, %v187
      %190 = vmatprep.subr.mxu0 0.0
      %191 = vmatpush1.msra.mxu0 %v182
      %192 = vmatprep.subr.mxu0 0.0
      %193 = vmatpush1.msra.mxu0 %v181
      %194 = vmatprep.subr.mxu0 0.0
      %195 = vmatpush1.msra.mxu0 %v180
      %196 = vmatprep.subr.mxu0 0.0
      %197 = vmatpush1.msra.mxu0 %v179
      %198 = vmatprep.subr.mxu0 0.0
      %199 = vmatpush1.msra.mxu0 %v178
      %200 = vmatprep.subr.mxu0 0.0
      %201 = vmatpush1.msra.mxu0 %v177
      %202 = vmatprep.subr.mxu0 0.0
      %203 = vmatpush1.msra.mxu0 %v176
      %204 = vmatprep.subr.mxu0 0.0
      %205 = vmatpush1.msra.mxu0 %v175
      %206 = vmatprep.subr.mxu0 0.0
      %207 = vmatpush1.msra.mxu0 %v174
      %208 = vmatprep.subr.mxu0 0.0
      %209 = vmatpush1.msra.mxu0 %v173
      %210 = vmatprep.subr.mxu0 0.0
      %211 = vmatpush1.msra.mxu0 %v172
      %212 = vmatprep.subr.mxu0 0.0
      %213 = vmatpush1.msra.mxu0 %v171
      %214 = vmatprep.subr.mxu0 0.0
      %215 = vmatpush1.msra.mxu0 %v170
      %216 = vmatprep.subr.mxu0 0.0
      %217 = vmatpush1.msra.mxu0 %v169
      %218 = vmatprep.subr.mxu0 0.0
      %219 = vmatpush1.msra.mxu0 %v168
      %220 = vmatprep.subr.mxu0 0.0
      %221 = vmatpush1.msra.mxu0 %v167
      %222 = vmatprep.subr.mxu0 0.0
      %223 = vmatpush2.msra.mxu0 0.0
      %224 = vmatprep.subr.mxu0 0.0
      %225 = vmatpush2.msra.mxu0 0.0
      %226 = vmatprep.subr.mxu0 0.0
      %227 = vmatpush2.msra.mxu0 0.0
      %228 = vmatprep.subr.mxu0 0.0
      %229 = vmatpush2.msra.mxu0 0.0
      %230 = vmatprep.subr.mxu0 0.0
      %231 = vmatpush2.msra.mxu0 0.0
      %232 = vmatprep.subr.mxu0 0.0
      %233 = vmatpush2.msra.mxu0 0.0
      %234 = vmatprep.subr.mxu0 0.0
      %235 = vmatpush2.msra.mxu0 0.0
      %236 = vmatprep.subr.mxu0 0.0
      %237 = vmatpush2.msra.mxu0 0.0
      %238 = vmatprep.subr.mxu0 0.0
      %239 = vmatpush2.msra.mxu0 0.0
      %240 = vmatprep.subr.mxu0 0.0
      %241 = vmatpush2.msra.mxu0 0.0
      %242 = vmatprep.subr.mxu0 0.0
      %243 = vmatpush2.msra.mxu0 0.0
      %244 = vmatprep.subr.mxu0 0.0
      %245 = vmatpush2.msra.mxu0 0.0
      %246 = vmatprep.subr.mxu0 0.0
      %247 = vmatpush2.msra.mxu0 0.0
      %248 = vmatprep.subr.mxu0 0.0
      %249 = vmatpush2.msra.mxu0 0.0
      %250 = vmatprep.subr.mxu0 0.0
      %251 = vmatpush2.msra.mxu0 0.0
      %252 = vmatprep.subr.mxu0 0.0
      %253 = vmatpush2.msra.mxu0 0.0
      %254 = vmatprep.mubr.f32.mxu0 0.0
      %255 = vmatmul.mubr.f32.gmra.mxu0 %v166
      %v256 = vpop.f32.mrf.mxu0
      %v257 = vadd.f32 %v188, %v256
      %v258 = vpop.f32.mrf.mxu0
      %259 = vdwg.mxu0
      %v260 = vtanh.pop %v257
      %261 = vst [vmem:[%s165] sm:$0xff] %v260
      %p262 = scmp.lt.s32.totalorder %s14, 1
      %s263 = scalar_select %p262, %s14, 1
      %s264 = smul.addr %s263, 8
      %s265 = scalar_lea.vmem %s3, %s264
      // Predicated region
      $region33: #{_lin_tanh_pallas.1} parent=31 // pred_check
        %p266 = pneg %p100
      $region34: #{_lin_tanh_pallas.1} parent=31 // pred_check_branch
        %268 = sbr.rel (%p266) target = $region36
      $region35: #{_lin_tanh_pallas.1} parent=31 // pred_region
        _
      $region36: #{_lin_tanh_pallas.1} parent=31 // pred_fallthru
        _
    $region32: #{_lin_tanh_pallas.1} parent=5 // pred_fallthru
      _
    %p269 = scmp.le.s32.totalorder 2, %s9
    // Predicated region
    $region37: #{_lin_tanh_pallas.1} parent=5 // pred_check
      %p270 = pneg %p269
    $region38: #{_lin_tanh_pallas.1} parent=5 // pred_check_branch
      %272 = sbr.rel (%p270) target = $region40
    $region39: #{_lin_tanh_pallas.1} parent=5 // pred_region
      %s273 = ssub.s32 %s9, 2
      // Predicated region
      $region41: #{_lin_tanh_pallas.1} parent=39 // pred_check
        %p274 = pneg %p106
      $region42: #{_lin_tanh_pallas.1} parent=39 // pred_check_branch
        %276 = sbr.rel (%p274) target = $region44
      $region43: #{_lin_tanh_pallas.1} parent=39 // pred_region
        %p277 = scmp.lt.s32.totalorder %s15, 1
        %s278 = scalar_select %p277, %s15, 1
        %s279 = smul.addr %s278, 8
        %s280 = scalar_lea.vmem %s3, %s279
      $region44: #{_lin_tanh_pallas.1} parent=39 // pred_fallthru
        _
    $region40: #{_lin_tanh_pallas.1} parent=5 // pred_fallthru
      _
  $region6: #{_lin_tanh_pallas.1} parent=0 // loop_footer
    %s13 = sadd.s32 1, %s9
  $region7: #{_lin_tanh_pallas.1} parent=0 // loop_footer_branch
    %8 = sbr.rel target = $region3
  $region8: #{_lin_tanh_pallas.1} parent=0 // loop_exit
    _

</llo_original>
